<compile_context>
chip_gen: v6e
topology: v6e:2x2x1
jax: 0.10.0
libtpu: 0.0.40
codegen_flags: <defaults>
</compile_context>

<pallas_src>
import math

import jax
import jax.numpy as jnp
from jax import lax
from jax.experimental import pallas as pl
from jax.experimental.pallas import tpu as pltpu


_LANES = 128            # vreg lane width
_MAX_BLOCK_ROWS = 512   # 512x128 f32 = 256 KiB per buffer (measured ~85% HBM roofline)


# ----------------------------------------------------------------------------
# Kernel 1: forward() pass-through (PyTorch forward is `pass`, i.e. a no-op).
# TODO(synk): TrainerBase.forward returns None in PyTorch; we expose an identity
#             kernel on the model input instead of fabricating compute.
# ----------------------------------------------------------------------------
def _copy_kernel(x_ref, o_ref):
    o_ref[...] = x_ref[...]


def forward_passthrough(x):
    numel = x.size
    if x.dtype.itemsize == 4 and numel % (8 * _LANES) == 0:
        # Lane-dense 2D slab: last dim = 128 lanes, rows multiple of 8 sublanes.
        rows = numel // _LANES
        x2d = x.reshape(rows, _LANES)                  # contiguous reshape (bitcast)
        block_rows = min(_MAX_BLOCK_ROWS, rows)        # multiple of 8 by construction
        grid = (pl.cdiv(rows, block_rows),)
        y2d = pl.pallas_call(
            _copy_kernel,
            out_shape=jax.ShapeDtypeStruct((rows, _LANES), x.dtype),
            grid=grid,
            in_specs=[pl.BlockSpec((block_rows, _LANES), lambda i: (i, 0))],
            out_specs=pl.BlockSpec((block_rows, _LANES), lambda i: (i, 0)),
            input_output_aliases={0: 0},               # pure pass-through: alias buffers
            compiler_params=pltpu.CompilerParams(
                dimension_semantics=("parallel",)),    # v7x: split copy across 2 TCs
        )(x2d)
        return y2d.reshape(x.shape)

    # TODO(synk): fallback single full-array block for shapes that are not a
    #             whole number of 4-byte vregs; only appropriate for small tensors.
    return pl.pallas_call(
        _copy_kernel,
        out_shape=jax.ShapeDtypeStruct(x.shape, x.dtype),
        in_specs=[pl.BlockSpec(x.shape, lambda: (0,) * x.ndim)],
        out_specs=pl.BlockSpec(x.shape, lambda: (0,) * x.ndim),
        input_output_aliases={0: 0},
        grid=(),
    )(x)


# ----------------------------------------------------------------------------
# Kernel 2: learning-rate schedule "type1":
#   lr(epoch) = base_lr * 0.1 ** ((epoch - 1) // 10), epoch = 1..N
# base_lr lives in SMEM (single scalar); output is a lane-dense f32 table sized
# from num_epochs.  Decay uses the EUP exp slot (kept in f32: v5e has no bf16 EUP).
# ----------------------------------------------------------------------------
def _lr_type1_kernel(base_ref, lr_ref):
    rows, cols = lr_ref.shape
    row = lax.broadcasted_iota(jnp.int32, (rows, cols), 0)
    col = lax.broadcasted_iota(jnp.int32, (rows, cols), 1)
    epoch = row * cols + col + 1                       # 1-based epoch index
    exponent = ((epoch - 1) // 10).astype(jnp.float32)
    # 0.1 ** k == exp(k * ln 0.1)
    # TODO(synk): exp-based power differs from exact 0.1**k in the last f32 bits
    #             at very large k; acceptable for an LR schedule.
    decay = jnp.exp(exponent * jnp.float32(math.log(0.1)))
    lr_ref[...] = base_ref[0] * decay


def lr_schedule_type1(base_lr, num_epochs):
    rows_needed = pl.cdiv(int(num_epochs), _LANES)
    rows = max(8, ((rows_needed + 7) // 8) * 8)        # sublane-aligned, no epoch cap
    base = jnp.asarray(base_lr, jnp.float32).reshape(1)
    lr_grid = pl.pallas_call(
        _lr_type1_kernel,
        out_shape=jax.ShapeDtypeStruct((rows, _LANES), jnp.float32),
        in_specs=[pl.BlockSpec(memory_space=pltpu.MemorySpace.SMEM)],
        out_specs=pl.BlockSpec((rows, _LANES), lambda: (0, 0)),
        grid=(),
    )(base)
    return lr_grid.reshape(-1)[:num_epochs]            # lr for epochs 1..N


# ----------------------------------------------------------------------------
# Kernel 3: EarlyStopping update step — packed SMEM scalars in and out.
# in : f32[3] = (val_loss, best_score, delta),  i32[3] = (counter, patience, has_best)
# out: f32[1] = (new_best_score,),              i32[4] = (new_counter, early_stop, save_ckpt, 0)
# ----------------------------------------------------------------------------
def _early_stopping_kernel(f_in, i_in, f_out, i_out):
    val_loss = f_in[0]
    best = f_in[1]
    delta = f_in[2]
    counter = i_in[0]
    patience = i_in[1]
    has_best = i_in[2]

    score = -val_loss
    first = has_best == 0
    worse = jnp.logical_and(jnp.logical_not(first), score < best + delta)

    new_counter = jnp.where(worse, counter + 1, jnp.int32(0))
    f_out[0] = jnp.where(worse, best, score)
    i_out[0] = new_counter
    i_out[1] = jnp.where(jnp.logical_and(worse, new_counter >= patience),
                         jnp.int32(1), jnp.int32(0))
    i_out[2] = jnp.where(worse, jnp.int32(0), jnp.int32(1))
    i_out[3] = jnp.int32(0)


def early_stopping_step(val_loss, best_score, counter, delta, patience, has_best):
    f_in = jnp.stack([jnp.asarray(val_loss, jnp.float32),
                      jnp.asarray(best_score, jnp.float32),
                      jnp.asarray(delta, jnp.float32)])
    i_in = jnp.stack([jnp.asarray(counter, jnp.int32),
                      jnp.asarray(patience, jnp.int32),
                      jnp.asarray(has_best, jnp.int32)])
    smem = pl.BlockSpec(memory_space=pltpu.MemorySpace.SMEM)
    f_out, i_out = pl.pallas_call(
        _early_stopping_kernel,
        out_shape=(jax.ShapeDtypeStruct((1,), jnp.float32),
                   jax.ShapeDtypeStruct((4,), jnp.int32)),
        in_specs=[smem, smem],
        out_specs=(smem, smem),
        grid=(),
    )(f_in, i_in)
    # new_best, new_counter, early_stop_flag, save_checkpoint_flag (device scalars)
    return f_out[0], i_out[0], i_out[1], i_out[2]


# ----------------------------------------------------------------------------
# Thin JAX-side TrainerBase mirroring the PyTorch __init__ validation logic.
# No parameters exist in the PyTorch module (it is a trainer shell).
# ----------------------------------------------------------------------------
class TrainerBase:
    def __init__(self, epoches, train_loader, optimizer, device,
                 IFEarlyStopping, IFadjust_learning_rate, **kwargs):
        if epoches is None:
            raise ValueError('请传入训练总迭代次数')
        if train_loader is None:
            raise ValueError('请传入train_loader')
        if optimizer is None:
            raise ValueError('请传入优化器类')
        if device is None:
            raise ValueError('请传入运行设备类型')
        self.epoches = epoches
        self.train_loader = train_loader
        self.optimizer = optimizer
        self.device = device

        self.IFEarlyStopping = IFEarlyStopping
        if IFEarlyStopping:
            if 'patience' not in kwargs:
                raise ValueError('启用提前停止策略必须输入{patience=int X}参数')
            self.patience = kwargs['patience']
            if 'val_loader' not in kwargs:
                raise ValueError('启用提前停止策略必须输入验证集val_loader')
            self.val_loader = kwargs['val_loader']
            # state kept as device arrays: no per-epoch host round-trips
            self.best_score = jnp.float32(0.0)
            self.counter = jnp.int32(0)
            self.has_best = 0
            self.delta = 0.0

        self.IFadjust_learning_rate = IFadjust_learning_rate
        if IFadjust_learning_rate:
            if 'types' not in kwargs:
                raise ValueError('启用学习率调整策略必须选择学习率调整策略参数types')
            self.types = kwargs['types']
            self.lr_adjust = kwargs.get('lr_adjust', None)
        self._lr_table = None
        self._lr_table_base = None

    def adjust_learning_rate(self, epoch, learning_rate):
        if self.types == 'type1':
            # Compute the whole schedule once with the Pallas kernel and cache it.
            if self._lr_table is None or self._lr_table_base != learning_rate:
                self._lr_table = lr_schedule_type1(learning_rate, self.epoches)
                self._lr_table_base = learning_rate
            return self._lr_table[epoch - 1]           # device scalar (no host sync)
        elif self.types == 'type2':
            lr_adjust = self.lr_adjust or {5: 1e-4, 10: 5e-5, 20: 1e-5, 25: 5e-6,
                                           30: 1e-6, 35: 5e-7, 40: 1e-8}
            return lr_adjust.get(epoch, None)
        raise ValueError('请从{type1 or type2}中选择types')

    def early_stopping_update(self, val_loss):
        new_best, new_counter, stop, save = early_stopping_step(
            val_loss, self.best_score, self.counter, self.delta,
            self.patience, self.has_best)
        self.best_score = new_best      # stays on device
        self.counter = new_counter      # stays on device
        self.has_best = 1
        # TODO(synk): torch.save checkpoint I/O has no Pallas equivalent; the
        #             save flag is returned instead of writing a .pth file.
        return stop, save               # device i32 scalars; caller syncs if needed

    def forward(self, model_input, *args, **kwargs):
        # PyTorch forward is a no-op; pass the input through a Pallas kernel.
        return forward_passthrough(model_input)


if __name__ == "__main__":
    key = jax.random.PRNGKey(0)
    # Small NCHW tensor consistent with a diffusion-model trainer input.
    x = jax.random.normal(key, (2, 4, 16, 16), dtype=jnp.float32)

    trainer = TrainerBase(
        epoches=20, train_loader=object(), optimizer=object(), device="tpu",
        IFEarlyStopping=True, IFadjust_learning_rate=True,
        patience=3, val_loader=object(), types='type1')

    # forward (lane-dense identity kernel)
    y = jax.block_until_ready(trainer.forward(x))
    assert y.shape == x.shape and bool(jnp.allclose(y, x))

    # learning-rate schedule kernel vs reference (full table + cached lookup)
    lrs = jax.block_until_ready(lr_schedule_type1(1e-3, 20))
    ref = jnp.array([1e-3 * 0.1 ** ((e - 1) // 10) for e in range(1, 21)],
                    jnp.float32)
    assert jnp.allclose(lrs, ref, rtol=1e-5)
    lr5 = trainer.adjust_learning_rate(5, 1e-3)     # builds + caches the table
    lr15 = trainer.adjust_learning_rate(15, 1e-3)   # cached: no kernel relaunch
    assert abs(float(lr5) - 1e-3) / 1e-3 < 1e-5
    assert abs(float(lr15) - 1e-4) / 1e-4 < 1e-5

    # early stopping kernel: loss improves then worsens then improves
    stop1, save1 = trainer.early_stopping_update(1.0)   # first call -> save
    stop2, save2 = trainer.early_stopping_update(2.0)   # worse -> counter 1
    stop3, save3 = trainer.early_stopping_update(0.5)   # better -> save, reset
    flags = jax.block_until_ready((stop1, save1, stop2, save2, stop3, save3))
    stop1, save1, stop2, save2, stop3, save3 = (int(v) for v in flags)
    assert save1 == 1 and stop1 == 0
    assert save2 == 0 and stop2 == 0
    assert save3 == 1 and stop3 == 0

    print("KERNEL_OK")
</pallas_src>

<mosaic_0001>
module attributes {stable_mosaic.version = 11 : i64} {
  func.func @_copy_kernel(%arg0: i32, %arg1: memref<16x128xf32, #tpu.memory_space<vmem>>, %arg2: memref<16x128xf32, #tpu.memory_space<vmem>>) attributes {dimension_semantics = [#tpu.dimension_semantics<parallel>], iteration_bounds = array<i64: 1>, scalar_prefetch = 0 : i64, scratch_operands = 0 : i64, tpu.core_type = #tpu.core_type<tc>, window_params = [{transform_indices = @transform_0, window_bounds = array<i64: 16, 128>}, {transform_indices = @transform_1, window_bounds = array<i64: 16, 128>}]} {
    %c0 = arith.constant 0 : index
    %c0_0 = arith.constant 0 : index
    %0 = vector.load %arg1[%c0, %c0_0] : memref<16x128xf32, #tpu.memory_space<vmem>>, vector<16x128xf32>
    %c0_1 = arith.constant 0 : index
    %c0_2 = arith.constant 0 : index
    %1 = vector.load %arg2[%c0_1, %c0_2] : memref<16x128xf32, #tpu.memory_space<vmem>>, vector<16x128xf32>
    tpu.vector_store %arg2[%c0_1, %c0_2], %0 {strides = array<i32>} : memref<16x128xf32, #tpu.memory_space<vmem>>, vector<16x128xf32>,
    return
  }
  func.func @transform_0(%arg0: i32) -> (i32, i32) {
    %c0_i32 = arith.constant 0 : i32
    %c0_i32_0 = arith.constant 0 : i32
    return %arg0, %c0_i32 : i32, i32
  }
  func.func @transform_1(%arg0: i32) -> (i32, i32) {
    %c0_i32 = arith.constant 0 : i32
    %c0_i32_0 = arith.constant 0 : i32
    return %arg0, %c0_i32 : i32, i32
  }
}

</mosaic_0001>

<llo_original>
// kernel: tpu_custom_call.1
$region0: #{tpu_custom_call.1}
  #allocation0 [shape = 'u32[]', space=smem, size = 0x4, offset = 0x4, fixed_abs, tag = 'smem constant byte address 0x4 - core index']
  #allocation1 [shape = 'u32[144,128]{1,0:T(1,128)}', space=vmem, size = 0x12000, scoped, tag = 'internal scratch']
  %s0 = inlined_call_operand.hbm [shape: f32[16,128], index: 0, kind: input, shape index: {}, may-alias: {0,1}]
  %s1 = inlined_call_operand.hbm [shape: f32[16,128], index: 1, kind: output, shape index: {}, may-alias: {0,1}]
  %s2 = sld [smem:[#allocation0]]
  $region18: #{tpu_custom_call.1} parent=0
    _
  %s4 = ssub.s32 1, %s2
  %s5 = scalar_select 0, %s4, %s2
  $region1: #{tpu_custom_call.1} parent=0
    #allocation2 [shape = 'u8[8192]{0}', space=vmem, size = 0x2000, scoped, tag = 'input window, operand 0, single buffered']
    #allocation3 [shape = 's32[1]{0}', space=sflag, size = 0x4, scoped, tag = 'scoped memory for tpu_custom_call.1']
    #allocation4 [shape = 's32[1]{0}', space=sflag, size = 0x4, scoped, tag = 'scoped memory for tpu_custom_call.1']
    #allocation5 [shape = 'u8[8192]{0}', space=vmem, size = 0x2000, scoped, tag = 'output window, operand 0, single buffered']
    %6 = vsyncpa [#allocation3], 0
    %7 = vsyncpa [#allocation4], 0
    // Predicated region
    $region2: #{tpu_custom_call.1} parent=1 // pred_check
      _
    $region3: #{tpu_custom_call.1} parent=1 // pred_check_branch
      %9 = sbr.rel (0) target = $region5
    $region4: #{tpu_custom_call.1} parent=1 // pred_region
      %s11 = ssub.s32 256, 256
      %12 = vsyncadd [#allocation3], %s11
      %s13 = sshll.u32 [#allocation2], 4
      %s14 = int_to_ptr.vmem [resolvable:$true] %s13
      %19 = dma.hbm_to_vmem [thread:$0]  %s0, 256, %s14, [#allocation3], 128, 128, 8
    $region5: #{tpu_custom_call.1} parent=1 // pred_fallthru
      _
    // Predicated region
    $region6: #{tpu_custom_call.1} parent=1 // pred_check
      _
    $region7: #{tpu_custom_call.1} parent=1 // pred_check_branch
      %21 = sbr.rel (0) target = $region9
    $region8: #{tpu_custom_call.1} parent=1 // pred_region
      %22 = dma.done [#allocation3], 256
    $region9: #{tpu_custom_call.1} parent=1 // pred_fallthru
      _
    %v23 = vld [vmem:[#allocation2] sm:$0xff]
    %v24 = vld [vmem:[#allocation2 + $0x8] sm:$0xff]
    %25 = vst [vmem:[#allocation5] sm:$0xff] %v23
    %26 = vst [vmem:[#allocation5 + $0x8] sm:$0xff] %v24
    // Predicated region
    $region10: #{tpu_custom_call.1} parent=1 // pred_check
      _
    $region11: #{tpu_custom_call.1} parent=1 // pred_check_branch
      %28 = sbr.rel (0) target = $region13
    $region12: #{tpu_custom_call.1} parent=1 // pred_region
      %s30 = ssub.s32 256, 256
      %31 = vsyncadd [#allocation4], %s30
      %s32 = sshll.u32 [#allocation5], 4
      %s33 = int_to_ptr.vmem [resolvable:$true] %s32
      %38 = dma.vmem_to_hbm [thread:$0]  %s33, 256, %s1, [#allocation4], 128, 128, 8
    $region13: #{tpu_custom_call.1} parent=1 // pred_fallthru
      _
    // Predicated region
    $region14: #{tpu_custom_call.1} parent=1 // pred_check
      _
    $region15: #{tpu_custom_call.1} parent=1 // pred_check_branch
      %40 = sbr.rel (0) target = $region17
    $region16: #{tpu_custom_call.1} parent=1 // pred_region
      %41 = dma.done [#allocation4], 256
    $region17: #{tpu_custom_call.1} parent=1 // pred_fallthru
      _
    %42 = vsyncpa [#allocation3], 1
    %43 = vsyncpa [#allocation4], 1

</llo_original>
